<compile_context>
chip_gen: v7x
topology: tpu7x:2x2x1
jax: 0.10.0
libtpu: 0.0.40
codegen_flags: <defaults>
</compile_context>

<pallas_src>
import functools

import jax
import jax.numpy as jnp
from jax.experimental import pallas as pl
from jax.experimental.pallas import tpu as pltpu


def _gram_mse_kernel(f_row_ref, f_col_ref, tgt_ref, loss_ref,
                     acc_g_ref, acc_sq_ref, *, inv_numel, inv_mse):
    i = pl.program_id(0)
    j = pl.program_id(1)
    k = pl.program_id(2)
    ni = pl.num_programs(0)
    nj = pl.num_programs(1)
    nk = pl.num_programs(2)

    # Zero the squared-error accumulator once, at the very first grid step.
    @pl.when((i == 0) & (j == 0) & (k == 0))
    def _():
        acc_sq_ref[...] = jnp.zeros_like(acc_sq_ref)

    # Zero the Gram-tile accumulator at the start of every K sweep.
    @pl.when(k == 0)
    def _():
        acc_g_ref[...] = jnp.zeros_like(acc_g_ref)

    # MXU: partial G[i, j] += f[i, :] @ f[j, :]^T  (contract the K axis of both).
    acc_g_ref[...] += jax.lax.dot_general(
        f_row_ref[...], f_col_ref[...],
        dimension_numbers=(((1,), (1,)), ((), ())),
        preferred_element_type=jnp.float32)

    # Last K step: finish this Gram tile and fold its squared error into the
    # vreg-wide accumulator (no per-tile scalar reduce, no HBM write of G).
    @pl.when(k == nk - 1)
    def _():
        g = acc_g_ref[...] * inv_numel
        d = g - tgt_ref[...].astype(jnp.float32)
        acc_sq_ref[...] += d * d

    # Very last grid step: one cross-lane reduce -> mean -> lane-dense store.
    @pl.when((i == ni - 1) & (j == nj - 1) & (k == nk - 1))
    def _():
        total = jnp.sum(acc_sq_ref[...]) * inv_mse
        loss_ref[...] = jnp.full(loss_ref.shape, total, dtype=jnp.float32)


def _pick_tile(dim, candidates):
    for c in candidates:
        if dim % c == 0:
            return c
    return dim  # full extent is always a legal block size


def gram_mse_loss(f, target_gram, *, numel):
    """loss = mean((f @ f.T / numel - target_gram)**2), fused in one kernel."""
    M, K = f.shape
    assert target_gram.shape == (M, M)
    # Tile sizes: big lane-dense K blocks; stays well inside the 32 MiB scoped
    # VMEM default (and v7x's 64 MiB physical) once double-buffered.
    tm = _pick_tile(M, (256, 128))
    tn = tm
    tk = _pick_tile(K, (2048, 1024, 512, 256, 128))
    grid = (M // tm, M // tn, K // tk)

    kernel = functools.partial(
        _gram_mse_kernel,
        inv_numel=1.0 / float(numel),
        inv_mse=1.0 / float(M * M))

    loss = pl.pallas_call(
        kernel,
        out_shape=jax.ShapeDtypeStruct((1, 128), jnp.float32),
        grid_spec=pltpu.PrefetchScalarGridSpec(
            num_scalar_prefetch=0,
            grid=grid,
            in_specs=[
                pl.BlockSpec((tm, tk), lambda i, j, k: (i, k)),   # row tiles of f
                pl.BlockSpec((tn, tk), lambda i, j, k: (j, k)),   # col tiles of f (same array)
                pl.BlockSpec((tm, tn), lambda i, j, k: (i, j)),   # target Gram tile
            ],
            out_specs=pl.BlockSpec((1, 128), lambda i, j, k: (0, 0)),
            scratch_shapes=[
                pltpu.VMEM((tm, tn), jnp.float32),   # Gram-tile accumulator
                pltpu.VMEM((tm, tn), jnp.float32),   # squared-error accumulator
            ],
        ),
        compiler_params=pltpu.CompilerParams(
            # Loss accumulator is shared across all axes -> keep them serial.
            dimension_semantics=("arbitrary", "arbitrary", "arbitrary"),
        ),
    )(f, f, target_gram)
    return loss[0, 0]


def gram_matrix(x):
    """Pure-JAX mirror of GramMatrix (used only for module-init target)."""
    b, h, w, c = x.shape
    f = x.reshape(b * h, w * c)
    return jnp.dot(f, f.T, precision=jax.lax.Precision.HIGHEST) / x.size


def make_style_loss_state(target_feature, use_mask=False, invert_mask=False):
    """Mirror of StyleLoss.__init__: returns (target_gram, mask)."""
    if use_mask:
        mask = jnp.zeros(target_feature.shape, dtype=bool)
        mask = mask.at[:, :, :, : target_feature.shape[-1] // 2].set(True)
        if invert_mask:
            mask = ~mask
        target = gram_matrix(target_feature * mask)
    else:
        mask = None
        target = gram_matrix(target_feature)
    return target.astype(jnp.float32), mask


def style_loss_forward(x, target_gram, mask=None):
    """Mirror of StyleLoss.forward: returns (input, loss)."""
    # TODO(synk): fuse the mask multiply into the gram kernel's tile loads to
    # save one elementwise HBM pass when use_mask=True.
    xm = x * mask if mask is not None else x
    b, h, w, c = x.shape                    # GramMatrix unpacks (batch, h, w, map_num)
    f = xm.reshape(b * h, w * c)
    loss = gram_mse_loss(f, target_gram, numel=x.size)
    return x, loss                          # identity pass-through: no kernel writeback


if __name__ == "__main__":
    key = jax.random.PRNGKey(0)
    kx, kt = jax.random.split(key)

    # Small feature-map shapes (GramMatrix treats them as (batch, h, w, map_num)).
    B, H, W, C = 2, 4, 16, 16
    x = jax.random.normal(kx, (B, H, W, C), dtype=jnp.float32)
    target_feature = jax.random.normal(kt, (B, H, W, C), dtype=jnp.float32)

    def ref_loss(x, target_gram, mask):
        xm = x * mask if mask is not None else x
        b, h, w, c = x.shape
        f = xm.reshape(b * h, w * c)
        G = jnp.dot(f, f.T, precision=jax.lax.Precision.HIGHEST) / x.size
        return jnp.mean((G - target_gram) ** 2)

    # --- use_mask=False path (module default) ---
    target, mask = make_style_loss_state(target_feature, use_mask=False)
    y, loss = style_loss_forward(x, target, mask)
    y = jax.block_until_ready(y)
    loss = jax.block_until_ready(loss)
    assert jnp.allclose(y, x), "pass-through output mismatch"
    r = ref_loss(x, target, None)
    assert jnp.allclose(loss, r, rtol=2e-2, atol=1e-7), (loss, r)

    # --- use_mask=True path ---
    target_m, mask_m = make_style_loss_state(target_feature, use_mask=True)
    y2, loss2 = style_loss_forward(x, target_m, mask_m)
    loss2 = jax.block_until_ready(loss2)
    assert jnp.allclose(y2, x), "pass-through output mismatch (masked)"
    r2 = ref_loss(x, target_m, mask_m)
    assert jnp.allclose(loss2, r2, rtol=2e-2, atol=1e-7), (loss2, r2)

    print("KERNEL_OK")
</pallas_src>

<mosaic_0001>
module attributes {stable_mosaic.version = 11 : i64} {
  func.func @_gram_mse_kernel(%arg0: i32, %arg1: i32, %arg2: i32, %arg3: memref<8x256xf32, #tpu.memory_space<vmem>>, %arg4: memref<8x256xf32, #tpu.memory_space<vmem>>, %arg5: memref<8x8xf32, #tpu.memory_space<vmem>>, %arg6: memref<1x128xf32, #tpu.memory_space<vmem>>, %arg7: memref<8x8xf32, #tpu.memory_space<vmem>>, %arg8: memref<8x8xf32, #tpu.memory_space<vmem>>) attributes {dimension_semantics = [#tpu.dimension_semantics<arbitrary>, #tpu.dimension_semantics<arbitrary>, #tpu.dimension_semantics<arbitrary>], iteration_bounds = array<i64: 1, 1, 1>, scalar_prefetch = 0 : i64, scratch_operands = 2 : i64, tpu.core_type = #tpu.core_type<tc>, window_params = [{transform_indices = @transform_0, window_bounds = array<i64: 8, 256>}, {transform_indices = @transform_1, window_bounds = array<i64: 8, 256>}, {transform_indices = @transform_2, window_bounds = array<i64: 8, 8>}, {pipeline_mode = #tpu.pipeline_mode<synchronous>, transform_indices = @transform_3, window_bounds = array<i64: 1, 128>}]} {
    %c0_i32 = arith.constant 0 : i32
    %0 = arith.cmpi eq, %arg0, %c0_i32 : i32
    %c0_i32_0 = arith.constant 0 : i32
    %1 = arith.cmpi eq, %arg1, %c0_i32_0 : i32
    %2 = arith.andi %0, %1 : i1
    %c0_i32_1 = arith.constant 0 : i32
    %3 = arith.cmpi eq, %arg2, %c0_i32_1 : i32
    %4 = arith.andi %2, %3 : i1
    %5 = arith.extui %4 : i1 to i32
    %c0_i32_2 = arith.constant 0 : i32
    %6 = arith.cmpi ne, %5, %c0_i32_2 : i32
    scf.if %6 {
      %cst_18 = arith.constant 0.000000e+00 : f32
      %26 = vector.broadcast %cst_18 : f32 to vector<8x8xf32>
      %c0_19 = arith.constant 0 : index
      %c0_20 = arith.constant 0 : index
      %27 = vector.load %arg8[%c0_19, %c0_20] : memref<8x8xf32, #tpu.memory_space<vmem>>, vector<8x8xf32>
      tpu.vector_store %arg8[%c0_19, %c0_20], %26 {strides = array<i32>} : memref<8x8xf32, #tpu.memory_space<vmem>>, vector<8x8xf32>,
    } else {
    }
    %c0_i32_3 = arith.constant 0 : i32
    %7 = arith.cmpi eq, %arg2, %c0_i32_3 : i32
    %8 = arith.extui %7 : i1 to i32
    %c0_i32_4 = arith.constant 0 : i32
    %9 = arith.cmpi ne, %8, %c0_i32_4 : i32
    scf.if %9 {
      %cst_18 = arith.constant 0.000000e+00 : f32
      %26 = vector.broadcast %cst_18 : f32 to vector<8x8xf32>
      %c0_19 = arith.constant 0 : index
      %c0_20 = arith.constant 0 : index
      %27 = vector.load %arg7[%c0_19, %c0_20] : memref<8x8xf32, #tpu.memory_space<vmem>>, vector<8x8xf32>
      tpu.vector_store %arg7[%c0_19, %c0_20], %26 {strides = array<i32>} : memref<8x8xf32, #tpu.memory_space<vmem>>, vector<8x8xf32>,
    } else {
    }
    %c0 = arith.constant 0 : index
    %c0_5 = arith.constant 0 : index
    %10 = vector.load %arg7[%c0, %c0_5] : memref<8x8xf32, #tpu.memory_space<vmem>>, vector<8x8xf32>
    %c0_6 = arith.constant 0 : index
    %c0_7 = arith.constant 0 : index
    %11 = vector.load %arg3[%c0_6, %c0_7] : memref<8x256xf32, #tpu.memory_space<vmem>>, vector<8x256xf32>
    %c0_8 = arith.constant 0 : index
    %c0_9 = arith.constant 0 : index
    %12 = vector.load %arg4[%c0_8, %c0_9] : memref<8x256xf32, #tpu.memory_space<vmem>>, vector<8x256xf32>
    %cst = arith.constant dense<0.000000e+00> : vector<8x8xf32>
    %13 = tpu.matmul %11, %12, %cst {dimension_numbers = #tpu.dot_dimension_numbers<[1], [1], [0], [0], [0, 0, 1, 0], [], []>} : vector<8x256xf32>, vector<8x256xf32>, vector<8x8xf32> -> vector<8x8xf32>
    %14 = arith.addf %10, %13 : vector<8x8xf32>
    %c0_10 = arith.constant 0 : index
    %c0_11 = arith.constant 0 : index
    %15 = vector.load %arg7[%c0_10, %c0_11] : memref<8x8xf32, #tpu.memory_space<vmem>>, vector<8x8xf32>
    tpu.vector_store %arg7[%c0_10, %c0_11], %14 {strides = array<i32>} : memref<8x8xf32, #tpu.memory_space<vmem>>, vector<8x8xf32>,
    %c0_i32_12 = arith.constant 0 : i32
    %16 = arith.cmpi eq, %arg2, %c0_i32_12 : i32
    %17 = arith.extui %16 : i1 to i32
    %c0_i32_13 = arith.constant 0 : i32
    %18 = arith.cmpi ne, %17, %c0_i32_13 : i32
    scf.if %18 {
      %c0_18 = arith.constant 0 : index
      %c0_19 = arith.constant 0 : index
      %26 = vector.load %arg7[%c0_18, %c0_19] : memref<8x8xf32, #tpu.memory_space<vmem>>, vector<8x8xf32>
      %cst_20 = arith.constant 4.8828125E-4 : f32
      %27 = vector.broadcast %cst_20 : f32 to vector<8x8xf32>
      %28 = arith.mulf %26, %27 : vector<8x8xf32>
      %c0_21 = arith.constant 0 : index
      %c0_22 = arith.constant 0 : index
      %29 = vector.load %arg5[%c0_21, %c0_22] : memref<8x8xf32, #tpu.memory_space<vmem>>, vector<8x8xf32>
      %30 = arith.subf %28, %29 : vector<8x8xf32>
      %c0_23 = arith.constant 0 : index
      %c0_24 = arith.constant 0 : index
      %31 = vector.load %arg8[%c0_23, %c0_24] : memref<8x8xf32, #tpu.memory_space<vmem>>, vector<8x8xf32>
      %32 = arith.mulf %30, %30 : vector<8x8xf32>
      %33 = arith.addf %31, %32 : vector<8x8xf32>
      %c0_25 = arith.constant 0 : index
      %c0_26 = arith.constant 0 : index
      %34 = vector.load %arg8[%c0_25, %c0_26] : memref<8x8xf32, #tpu.memory_space<vmem>>, vector<8x8xf32>
      tpu.vector_store %arg8[%c0_25, %c0_26], %33 {strides = array<i32>} : memref<8x8xf32, #tpu.memory_space<vmem>>, vector<8x8xf32>,
    } else {
    }
    %c0_i32_14 = arith.constant 0 : i32
    %19 = arith.cmpi eq, %arg0, %c0_i32_14 : i32
    %c0_i32_15 = arith.constant 0 : i32
    %20 = arith.cmpi eq, %arg1, %c0_i32_15 : i32
    %21 = arith.andi %19, %20 : i1
    %c0_i32_16 = arith.constant 0 : i32
    %22 = arith.cmpi eq, %arg2, %c0_i32_16 : i32
    %23 = arith.andi %21, %22 : i1
    %24 = arith.extui %23 : i1 to i32
    %c0_i32_17 = arith.constant 0 : i32
    %25 = arith.cmpi ne, %24, %c0_i32_17 : i32
    scf.if %25 {
      %c0_18 = arith.constant 0 : index
      %c0_19 = arith.constant 0 : index
      %26 = vector.load %arg8[%c0_18, %c0_19] : memref<8x8xf32, #tpu.memory_space<vmem>>, vector<8x8xf32>
      %27 = vector.shape_cast %26 : vector<8x8xf32> to vector<1x8x8xf32>
      %cst_20 = arith.constant dense<0.000000e+00> : vector<1xf32>
      %28 = vector.multi_reduction <add>, %27, %cst_20 [1, 2] : vector<1x8x8xf32> to vector<1xf32>
      %29 = vector.shape_cast %28 : vector<1xf32> to vector<1x1x1xf32>
      %30 = vector.extract %29[0, 0, 0] : f32 from vector<1x1x1xf32>
      %cst_21 = arith.constant 1.562500e-02 : f32
      %31 = arith.mulf %30, %cst_21 : f32
      %32 = vector.broadcast %31 : f32 to vector<1x128xf32>
      %c0_22 = arith.constant 0 : index
      %c0_23 = arith.constant 0 : index
      %33 = vector.load %arg6[%c0_22, %c0_23] : memref<1x128xf32, #tpu.memory_space<vmem>>, vector<1x128xf32>
      tpu.vector_store %arg6[%c0_22, %c0_23], %32 {strides = array<i32>} : memref<1x128xf32, #tpu.memory_space<vmem>>, vector<1x128xf32>,
    } else {
    }
    return
  }
  func.func @transform_0(%arg0: i32, %arg1: i32, %arg2: i32) -> (i32, i32) {
    %c0_i32 = arith.constant 0 : i32
    return %arg0, %arg2 : i32, i32
  }
  func.func @transform_1(%arg0: i32, %arg1: i32, %arg2: i32) -> (i32, i32) {
    %c0_i32 = arith.constant 0 : i32
    return %arg1, %arg2 : i32, i32
  }
  func.func @transform_2(%arg0: i32, %arg1: i32, %arg2: i32) -> (i32, i32) {
    %c0_i32 = arith.constant 0 : i32
    return %arg0, %arg1 : i32, i32
  }
  func.func @transform_3(%arg0: i32, %arg1: i32, %arg2: i32) -> (i32, i32) {
    %c0_i32 = arith.constant 0 : i32
    %c0_i32_0 = arith.constant 0 : i32
    %c0_i32_1 = arith.constant 0 : i32
    return %c0_i32, %c0_i32_0 : i32, i32
  }
}

</mosaic_0001>

<llo_original>
// kernel: tpu_custom_call.1
$region0: #{tpu_custom_call.1}
  #allocation0 [shape = 'u32[]', space=smem, size = 0x4, offset = 0x4, fixed_abs, tag = 'smem constant byte address 0x4 - core index']
  #allocation1 [shape = 'u32[144,128]{1,0:T(1,128)}', space=vmem, size = 0x12000, scoped, tag = 'internal scratch']
  #allocation2 [shape = 'f32[8,8]{1,0:T(8,128)}', space=vmem, size = 0x1000, scoped, tag = 'scratch operand']
  #allocation3 [shape = 'f32[8,8]{1,0:T(8,128)}', space=vmem, size = 0x1000, scoped, tag = 'scratch operand']
  %s0 = inlined_call_operand.hbm [shape: f32[8,256], index: 0, kind: input, shape index: {}]
  %s1 = inlined_call_operand.hbm [shape: f32[8,256], index: 1, kind: input, shape index: {}]
  %s2 = inlined_call_operand.hbm [shape: f32[8,8], index: 2, kind: input, shape index: {}]
  %s3 = inlined_call_operand.hbm [shape: f32[1,128], index: 3, kind: output, shape index: {}]
  %s4 = sld [smem:[#allocation0]]
  $region50: #{tpu_custom_call.1} parent=0
    _
  %s6 = ssub.s32 1, %s4
  %s7 = scalar_select 0, %s6, %s4
  $region1: #{tpu_custom_call.1} parent=0
    #allocation4 [shape = 'u8[8192]{0}', space=vmem, size = 0x2000, scoped, tag = 'input window, operand 0, single buffered']
    #allocation5 [shape = 's32[1]{0}', space=sflag, size = 0x4, scoped, tag = 'scoped memory for tpu_custom_call.1']
    #allocation6 [shape = 's32[1]{0}', space=sflag, size = 0x4, scoped, tag = 'scoped memory for tpu_custom_call.1']
    #allocation7 [shape = 'u8[8192]{0}', space=vmem, size = 0x2000, scoped, tag = 'input window, operand 1, single buffered']
    #allocation8 [shape = 's32[1]{0}', space=sflag, size = 0x4, scoped, tag = 'scoped memory for tpu_custom_call.1']
    #allocation9 [shape = 'u8[4096]{0}', space=vmem, size = 0x1000, scoped, tag = 'input window, operand 2, single buffered']
    #allocation10 [shape = 'u8[512]{0}', space=vmem, size = 0x400, scoped, tag = 'output window, operand 0, single buffered']
    %8 = vsyncpa [#allocation5], 0
    %9 = vsyncpa [#allocation8], 0
    %10 = vsyncpa [#allocation6], 0
    // Predicated region
    $region2: #{tpu_custom_call.1} parent=1 // pred_check
      _
    $region3: #{tpu_custom_call.1} parent=1 // pred_check_branch
      %12 = sbr.rel (0) target = $region5
    $region4: #{tpu_custom_call.1} parent=1 // pred_region
      %s14 = ssub.s32 256, 256
      %15 = vsyncadd [#allocation5], %s14
      %s17 = sshll.u32 [#allocation4], 4
      %s18 = int_to_ptr.vmem [resolvable:$true] %s17
      %20 = dma.hbm_to_vmem [thread:$0]  %s0, 256, %s18, [#allocation5]
    $region5: #{tpu_custom_call.1} parent=1 // pred_fallthru
      _
    // Predicated region
    $region6: #{tpu_custom_call.1} parent=1 // pred_check
      _
    $region7: #{tpu_custom_call.1} parent=1 // pred_check_branch
      %22 = sbr.rel (0) target = $region9
    $region8: #{tpu_custom_call.1} parent=1 // pred_region
      %s24 = ssub.s32 256, 256
      %25 = vsyncadd [#allocation8], %s24
      %s27 = sshll.u32 [#allocation7], 4
      %s28 = int_to_ptr.vmem [resolvable:$true] %s27
      %30 = dma.hbm_to_vmem [thread:$0]  %s1, 256, %s28, [#allocation8]
    $region9: #{tpu_custom_call.1} parent=1 // pred_fallthru
      _
    // Predicated region
    $region10: #{tpu_custom_call.1} parent=1 // pred_check
      _
    $region11: #{tpu_custom_call.1} parent=1 // pred_check_branch
      %32 = sbr.rel (0) target = $region13
    $region12: #{tpu_custom_call.1} parent=1 // pred_region
      %s34 = ssub.s32 128, 128
      %35 = vsyncadd [#allocation8], %s34
      %s37 = sshll.u32 [#allocation9], 4
      %s38 = int_to_ptr.vmem [resolvable:$true] %s37
      %40 = dma.hbm_to_vmem [thread:$0]  %s2, 128, %s38, [#allocation8]
    $region13: #{tpu_custom_call.1} parent=1 // pred_fallthru
      _
    // Predicated region
    $region14: #{tpu_custom_call.1} parent=1 // pred_check
      _
    $region15: #{tpu_custom_call.1} parent=1 // pred_check_branch
      %42 = sbr.rel (0) target = $region17
    $region16: #{tpu_custom_call.1} parent=1 // pred_region
      %43 = dma.done [#allocation5], 256
    $region17: #{tpu_custom_call.1} parent=1 // pred_fallthru
      _
    // Predicated region
    $region18: #{tpu_custom_call.1} parent=1 // pred_check
      _
    $region19: #{tpu_custom_call.1} parent=1 // pred_check_branch
      %45 = sbr.rel (0) target = $region21
    $region20: #{tpu_custom_call.1} parent=1 // pred_region
      %46 = dma.done [#allocation8], 256
    $region21: #{tpu_custom_call.1} parent=1 // pred_fallthru
      _
    // Predicated region
    $region22: #{tpu_custom_call.1} parent=1 // pred_check
      _
    $region23: #{tpu_custom_call.1} parent=1 // pred_check_branch
      %48 = sbr.rel (0) target = $region25
    $region24: #{tpu_custom_call.1} parent=1 // pred_region
      %49 = dma.done [#allocation8], 128
    $region25: #{tpu_custom_call.1} parent=1 // pred_fallthru
      _
    %p50 = scmp.eq.s32.totalorder 0, 0
    %p51 = scmp.eq.s32.totalorder 0, 0
    %p52 = pnand %p50, %p51
    %p53 = pneg %p52
    %p54 = scmp.eq.s32.totalorder 0, 0
    %p55 = pnand %p53, %p54
    %p56 = pneg %p55
    // Predicated region
    $region26: #{tpu_custom_call.1} parent=1 // pred_check
      _
    $region27: #{tpu_custom_call.1} parent=1 // pred_check_branch
      %58 = sbr.rel (%p55) target = $region29
    $region28: #{tpu_custom_call.1} parent=1 // pred_region
      %vm59 = vcmask 64512
      %60 = vst.msk [vmem:[#allocation3] sm:$0xff] %vm59, 0.0
    $region29: #{tpu_custom_call.1} parent=1 // pred_fallthru
      _
    // Predicated region
    $region30: #{tpu_custom_call.1} parent=1 // pred_check
      %p61 = pneg %p54
    $region31: #{tpu_custom_call.1} parent=1 // pred_check_branch
      %63 = sbr.rel (%p61) target = $region33
    $region32: #{tpu_custom_call.1} parent=1 // pred_region
      %vm64 = vcmask 64512
      %65 = vst.msk [vmem:[#allocation2] sm:$0xff] %vm64, 0.0
    $region33: #{tpu_custom_call.1} parent=1 // pred_fallthru
      _
    %v66 = vld [vmem:[#allocation2] sm:$0xff]
    %v67 = vld [vmem:[#allocation4] sm:$0xff]
    %v68 = vld [vmem:[#allocation4 + $0x8] sm:$0xff]
    %v69 = vld [vmem:[#allocation7] sm:$0xff]
    %v70 = vld [vmem:[#allocation7 + $0x8] sm:$0xff]
    %71 = vmatprep.subr.mxu0 %v70
    %72 = vmatpush1.xpose.msra.mxu0 %v69
    %73 = vmatprep.subr.mxu0 0.0
    %74 = vmatpush1.xpose.msra.mxu0 0.0
    %75 = vmatprep.subr.mxu0 0.0
    %76 = vmatpush1.xpose.msra.mxu0 0.0
    %77 = vmatprep.subr.mxu0 0.0
    %78 = vmatpush1.xpose.msra.mxu0 0.0
    %79 = vmatprep.subr.mxu0 0.0
    %80 = vmatpush1.xpose.msra.mxu0 0.0
    %81 = vmatprep.subr.mxu0 0.0
    %82 = vmatpush1.xpose.msra.mxu0 0.0
    %83 = vmatprep.subr.mxu0 0.0
    %84 = vmatpush1.xpose.msra.mxu0 0.0
    %85 = vmatprep.subr.mxu0 0.0
    %86 = vmatpush1.xpose.msra.mxu0 0.0
    %87 = vmatprep.subr.mxu0 0.0
    %88 = vmatpush1.xpose.msra.mxu0 0.0
    %89 = vmatprep.subr.mxu0 0.0
    %90 = vmatpush1.xpose.msra.mxu0 0.0
    %91 = vmatprep.subr.mxu0 0.0
    %92 = vmatpush1.xpose.msra.mxu0 0.0
    %93 = vmatprep.subr.mxu0 0.0
    %94 = vmatpush1.xpose.msra.mxu0 0.0
    %95 = vmatprep.subr.mxu0 0.0
    %96 = vmatpush1.xpose.msra.mxu0 0.0
    %97 = vmatprep.subr.mxu0 0.0
    %98 = vmatpush1.xpose.msra.mxu0 0.0
    %99 = vmatprep.subr.mxu0 0.0
    %100 = vmatpush1.xpose.msra.mxu0 0.0
    %101 = vmatprep.subr.mxu0 0.0
    %102 = vmatpush1.xpose.msra.mxu0 0.0
    %103 = vmatprep.subr.mxu0 0.0
    %104 = vmatpush1.xpose.msra.mxu0 0.0
    %105 = vmatprep.subr.mxu0 0.0
    %106 = vmatpush1.xpose.msra.mxu0 0.0
    %107 = vmatprep.subr.mxu0 0.0
    %108 = vmatpush1.xpose.msra.mxu0 0.0
    %109 = vmatprep.subr.mxu0 0.0
    %110 = vmatpush1.xpose.msra.mxu0 0.0
    %111 = vmatprep.subr.mxu0 0.0
    %112 = vmatpush1.xpose.msra.mxu0 0.0
    %113 = vmatprep.subr.mxu0 0.0
    %114 = vmatpush1.xpose.msra.mxu0 0.0
    %115 = vmatprep.subr.mxu0 0.0
    %116 = vmatpush1.xpose.msra.mxu0 0.0
    %117 = vmatprep.subr.mxu0 0.0
    %118 = vmatpush1.xpose.msra.mxu0 0.0
    %119 = vmatprep.subr.mxu0 0.0
    %120 = vmatpush1.xpose.msra.mxu0 0.0
    %121 = vmatprep.subr.mxu0 0.0
    %122 = vmatpush1.xpose.msra.mxu0 0.0
    %123 = vmatprep.subr.mxu0 0.0
    %124 = vmatpush1.xpose.msra.mxu0 0.0
    %125 = vmatprep.subr.mxu0 0.0
    %126 = vmatpush1.xpose.msra.mxu0 0.0
    %127 = vmatprep.subr.mxu0 0.0
    %128 = vmatpush1.xpose.msra.mxu0 0.0
    %129 = vmatprep.subr.mxu0 0.0
    %130 = vmatpush1.xpose.msra.mxu0 0.0
    %131 = vmatprep.subr.mxu0 0.0
    %132 = vmatpush1.xpose.msra.mxu0 0.0
    %133 = vmatprep.subr.mxu0 0.0
    %134 = vmatpush1.xpose.msra.mxu0 0.0
    %135 = vmatprep.mubr.f32.mxu0 %v68
    %136 = vmatmul.mubr.f32.gmra.mrb[0].mxu0 %v67
    %v137 = vpop.f32.mrb[0].mxu0
    %v138 = vadd.f32 0.0, %v137
    %v139 = vpop.f32.mrb[0].mxu0
    %140 = vdwg.mxu0
    %v141 = vadd.f32 %v66, %v138
    %vm142 = vcmask 64512
    %143 = vst.msk [vmem:[#allocation2] sm:$0xff] %vm142, %v141
    // Predicated region
    $region34: #{tpu_custom_call.1} parent=1 // pred_check
      %p144 = pneg %p54
    $region35: #{tpu_custom_call.1} parent=1 // pred_check_branch
      %146 = sbr.rel (%p144) target = $region37
    $region36: #{tpu_custom_call.1} parent=1 // pred_region
      %v147 = vld [vmem:[#allocation2] sm:$0xff]
      %v148 = vmul.f32 %v147, 0.00048828125
      %v149 = vld [vmem:[#allocation9] sm:$0xff]
      %v150 = vsub.f32 %v148, %v149
      %v151 = vld [vmem:[#allocation3] sm:$0xff]
      %v152 = vmul.f32 %v150, %v150
      %v153 = vadd.f32 %v151, %v152
      %154 = vst.msk [vmem:[#allocation3] sm:$0xff] %vm142, %v153
    $region37: #{tpu_custom_call.1} parent=1 // pred_fallthru
      _
    // Predicated region
    $region38: #{tpu_custom_call.1} parent=1 // pred_check
      _
    $region39: #{tpu_custom_call.1} parent=1 // pred_check_branch
      %156 = sbr.rel (%p55) target = $region41
    $region40: #{tpu_custom_call.1} parent=1 // pred_region
      %v157 = vld [vmem:[#allocation3] sm:$0xff]
      %v158 = vsel %vm142, %v157, 0.0
      %159 = vadd.xlane.f32.xlu0 %v158
      %v160 = vpop.xlane.xlu0 %159
      %v161 = vrot.slane %v160, 4
      %v162 = vadd.f32 %v160, %v161
      %v163 = vrot.slane %v162, 2
      %v164 = vadd.f32 %v162, %v163
      %v165 = vrot.slane %v164, 1
      %v166 = vadd.f32 %v164, %v165
      %s167 = vtos %v166
      %s168 = smul.f32 %s167, 0.015625
      %v169 = vstv %s168
      %170 = vst [vmem:[#allocation10] sm:$0x1] %v169
    $region41: #{tpu_custom_call.1} parent=1 // pred_fallthru
      _
    // Predicated region
    $region42: #{tpu_custom_call.1} parent=1 // pred_check
      _
    $region43: #{tpu_custom_call.1} parent=1 // pred_check_branch
      %172 = sbr.rel (0) target = $region45
    $region44: #{tpu_custom_call.1} parent=1 // pred_region
      %s174 = ssub.s32 16, 16
      %175 = vsyncadd [#allocation6], %s174
      %s177 = sshll.u32 [#allocation10], 4
      %s178 = int_to_ptr.vmem [resolvable:$true] %s177
      %180 = dma.vmem_to_hbm [thread:$0]  %s178, 16, %s3, [#allocation6]
    $region45: #{tpu_custom_call.1} parent=1 // pred_fallthru
      _
    // Predicated region
    $region46: #{tpu_custom_call.1} parent=1 // pred_check
      _
    $region47: #{tpu_custom_call.1} parent=1 // pred_check_branch
      %182 = sbr.rel (0) target = $region49
    $region48: #{tpu_custom_call.1} parent=1 // pred_region
      %183 = dma.done [#allocation6], 16
    $region49: #{tpu_custom_call.1} parent=1 // pred_fallthru
      _
    %184 = vsyncpa [#allocation5], 1
    %185 = vsyncpa [#allocation8], 1
    %186 = vsyncpa [#allocation6], 1

</llo_original>
